<compile_context>
chip_gen: v7x
topology: tpu7x:2x2x1
jax: 0.10.0
libtpu: 0.0.40
codegen_flags: <defaults>
</compile_context>

<pallas_src>
import functools

import jax
import jax.numpy as jnp
from jax.experimental import pallas as pl
from jax.experimental.pallas import tpu as pltpu


def _normalize_scale(scale_factor) -> int:
    """PyTorch Upsample accepts floats/tuples; we support positive integer scales."""
    if isinstance(scale_factor, (tuple, list)):
        vals = [float(v) for v in scale_factor]
        if len(vals) == 0 or any(v != vals[0] for v in vals):
            raise NotImplementedError("only uniform scale factors are supported")
        sf = vals[0]
    else:
        sf = float(scale_factor)
    s = int(round(sf))
    if s <= 0 or abs(sf - s) > 1e-9:
        # TODO(synk): non-integer scale factors, `size=`, and bilinear mode not implemented.
        raise NotImplementedError("only positive integer scale factors are supported")
    return s


# ---------------------------------------------------------------------------
# Generation-aware VMEM sizing.
# ---------------------------------------------------------------------------

def _vmem_params():
    """Returns (block_budget_bytes, vmem_limit_bytes) for this TPU generation."""
    mib = 1024 * 1024
    try:
        cap = int(pltpu.get_tpu_info().vmem_capacity_bytes)
    except Exception:
        cap = None
    if cap is None:
        budget, limit = 12 * mib, 40 * mib            # conservative (v7x-safe) default
    elif cap >= 100 * mib:                            # v5e / v6e: 128 MiB physical VMEM
        budget, limit = 24 * mib, 96 * mib
    else:                                             # v7x-class: 64 MiB physical
        budget, limit = 12 * mib, min(44 * mib, int(cap * 0.7))
    budget = min(budget, max(1 * mib, limit // 2))    # keep headroom under the limit
    return budget, limit


def _choose_row_tile(R, W, s, itemsize, budget_bytes):
    """Rows of the fused (N*C*H) axis per grid step."""
    # Sublane alignment of the block's second-minor dim, by dtype packing.
    align = {4: 8, 2: 16, 1: 32}.get(itemsize, 8)
    lane_pad = lambda n: pl.cdiv(n, 128) * 128        # account for VMEM lane padding
    # Input + output blocks, double buffered.
    bytes_per_row = 2 * (lane_pad(W) + lane_pad(s * s * W)) * itemsize
    rows = max(align, (budget_bytes // bytes_per_row) // align * align)
    # Keep >=4 grid steps when possible (v7x: 2 TensorCores; pipeline overlap
    # on all generations); >=2 otherwise.
    if R >= 4 * align:
        target_steps = 4
    elif R >= 2 * align:
        target_steps = 2
    else:
        target_steps = 1
    per_step = pl.cdiv(pl.cdiv(R, target_steps), align) * align
    rows = min(rows, per_step)
    return R if rows >= R else rows


# ---------------------------------------------------------------------------
# Primary path: NCHW row kernel (no wrapper transposes).
# ---------------------------------------------------------------------------

def _upsample_rows_kernel(x_ref, o_ref, *, scale: int):
    """x_ref: (rows, W); o_ref: (rows, scale*scale*W).

    o[r, a*(W*scale) + w*scale + b] = x[r, w]  for a, b in [0, scale),
    which is exactly the contiguous NCHW nearest-neighbor output layout
    (row r = (n, c, h); output rows h*scale + a are consecutive).
    """
    x = x_ref[...]
    rows, w = x.shape
    if scale == 1:
        o_ref[...] = x
        return
    # W-direction repeat: interleave along the lane axis via a minor-dim
    # broadcast + collapse (no big broadcast temp; value stays in vregs).
    y = jnp.broadcast_to(x[:, :, None], (rows, w, scale)).reshape(rows, w * scale)
    # H-direction repeat: the `a` copies are contiguous within each output row,
    # so a lane-axis concatenation finishes the row with a single dense store.
    o_ref[...] = jnp.concatenate([y] * scale, axis=-1)


def _upsample_nchw(x, s, budget, limit):
    N, C, H, W = x.shape
    itemsize = jnp.dtype(x.dtype).itemsize
    R = N * C * H
    rows = _choose_row_tile(R, W, s, itemsize, budget)

    x_rows = x.reshape(R, W)                          # free contiguous view

    out = pl.pallas_call(
        functools.partial(_upsample_rows_kernel, scale=s),
        out_shape=jax.ShapeDtypeStruct((R, s * s * W), x.dtype),
        grid_spec=pltpu.PrefetchScalarGridSpec(
            num_scalar_prefetch=0,
            grid=(pl.cdiv(R, rows),),
            in_specs=[pl.BlockSpec((rows, W), lambda i: (i, 0))],
            out_specs=pl.BlockSpec((rows, s * s * W), lambda i: (i, 0)),
        ),
        compiler_params=pltpu.CompilerParams(
            dimension_semantics=("parallel",),
            vmem_limit_bytes=limit,
        ),
        cost_estimate=pl.CostEstimate(
            flops=0,
            transcendentals=0,
            bytes_accessed=(1 + s * s) * x.size * itemsize,
        ),
    )(x_rows)

    return out.reshape(N, C, H * s, W * s)            # free contiguous view


# ---------------------------------------------------------------------------
# Fallback path: previously-validated channel-last kernel (pays 2 transposes).
# Only used if the minor-dim interleave reshape does not lower on this backend.
# ---------------------------------------------------------------------------

def _upsample_nhwc_kernel(x_ref, o_ref, *, scale: int):
    x = x_ref[...]                                    # (h_tile, W, C)
    y = jnp.concatenate([x] * scale, axis=-1) if scale > 1 else x
    o_ref[...] = jnp.broadcast_to(y[:, None, :, :], o_ref.shape)


def _upsample_nhwc_fallback(x, s, budget, limit):
    N, C, H, W = x.shape
    itemsize = jnp.dtype(x.dtype).itemsize
    x_nhwc = jnp.transpose(x, (0, 2, 3, 1))
    row_bytes = 2 * (1 + s * s) * W * C * itemsize
    h_tile = max(1, min(H, int(budget // max(row_bytes, 1))))
    out = pl.pallas_call(
        functools.partial(_upsample_nhwc_kernel, scale=s),
        out_shape=jax.ShapeDtypeStruct((N, H, s, W, s * C), x.dtype),
        grid_spec=pltpu.PrefetchScalarGridSpec(
            num_scalar_prefetch=0,
            grid=(N, pl.cdiv(H, h_tile)),
            in_specs=[pl.BlockSpec((None, h_tile, W, C), lambda n, i: (n, i, 0, 0))],
            out_specs=pl.BlockSpec((None, h_tile, s, W, s * C),
                                   lambda n, i: (n, i, 0, 0, 0)),
        ),
        compiler_params=pltpu.CompilerParams(
            dimension_semantics=("parallel", "parallel"),
            vmem_limit_bytes=limit,
        ),
    )(x_nhwc)
    return jnp.transpose(out.reshape(N, H * s, W * s, C), (0, 3, 1, 2))


@functools.lru_cache(maxsize=None)
def _nchw_path_ok(scale: int, dtype_name: str) -> bool:
    """One-time probe: does the NCHW row path lower and match on this backend?"""
    try:
        dtype = jnp.dtype(dtype_name)
        probe = jnp.arange(1 * 2 * 8 * 8, dtype=jnp.float32).astype(dtype)
        probe = probe.reshape(1, 2, 8, 8)
        got = _upsample_nchw(probe, scale, 4 * 1024 * 1024, 32 * 1024 * 1024)
        ref = jnp.repeat(jnp.repeat(probe, scale, axis=2), scale, axis=3)
        return bool(jnp.array_equal(got, ref))
    except Exception:
        return False


def upsample_nearest(x: jax.Array, scale_factor) -> jax.Array:
    """Nearest-neighbor upsampling of an NCHW tensor by an integer scale factor."""
    s = _normalize_scale(scale_factor)
    if x.ndim != 4:
        raise NotImplementedError("expected NCHW input")
    if s == 1:
        return x
    budget, limit = _vmem_params()
    if _nchw_path_ok(s, jnp.dtype(x.dtype).name):
        return _upsample_nchw(x, s, budget, limit)
    # TODO(synk): drop this fallback once the minor-dim interleave reshape is
    # guaranteed to lower on every deployed Mosaic version.
    return _upsample_nhwc_fallback(x, s, budget, limit)


class UpsamplePallas:
    """Mirror of the PyTorch Upsample module (nearest mode only)."""

    def __init__(self, scale_factor, mode: str = "nearest"):
        if mode != "nearest":
            # TODO(synk): bilinear / other F.interpolate modes not implemented.
            raise NotImplementedError("only 'nearest' mode implemented")
        self.scale_factor = _normalize_scale(scale_factor)
        self.mode = mode

    def __call__(self, x):
        return upsample_nearest(x, self.scale_factor)


if __name__ == "__main__":
    key = jax.random.PRNGKey(0)

    # Primary test: small shape consistent with the module.
    N, C, H, W = 2, 4, 16, 16
    x = jax.random.normal(key, (N, C, H, W), dtype=jnp.float32)
    model = UpsamplePallas(scale_factor=2, mode="nearest")
    out = jax.block_until_ready(model(x))
    ref = jnp.repeat(jnp.repeat(x, 2, axis=2), 2, axis=3)
    assert out.shape == (N, C, H * 2, W * 2), out.shape
    assert out.dtype == x.dtype
    assert jnp.array_equal(out, ref), "mismatch vs reference (16x16, s=2)"

    # YOLO-like odd spatial size: exercises the partial final row block (masked).
    x2 = jax.random.normal(jax.random.PRNGKey(0), (1, 3, 13, 13), dtype=jnp.float32)
    out2 = jax.block_until_ready(upsample_nearest(x2, 2))
    ref2 = jnp.repeat(jnp.repeat(x2, 2, axis=2), 2, axis=3)
    assert out2.shape == (1, 3, 26, 26), out2.shape
    assert jnp.array_equal(out2, ref2), "mismatch vs reference (13x13, s=2)"

    # Non-default integer scale factor.
    x3 = jax.random.normal(jax.random.PRNGKey(0), (1, 2, 8, 8), dtype=jnp.float32)
    out3 = jax.block_until_ready(upsample_nearest(x3, 3))
    ref3 = jnp.repeat(jnp.repeat(x3, 3, axis=2), 3, axis=3)
    assert out3.shape == (1, 2, 24, 24), out3.shape
    assert jnp.array_equal(out3, ref3), "mismatch vs reference (8x8, s=3)"

    print("KERNEL_OK")
</pallas_src>

<mosaic_0001>
module attributes {stable_mosaic.version = 11 : i64} {
  func.func @_upsample_rows_kernel(%arg0: i32, %arg1: memref<8x8xf32, #tpu.memory_space<vmem>>, %arg2: memref<8x32xf32, #tpu.memory_space<vmem>>) attributes {dimension_semantics = [#tpu.dimension_semantics<parallel>], iteration_bounds = array<i64: 2>, scalar_prefetch = 0 : i64, scratch_operands = 0 : i64, tpu.core_type = #tpu.core_type<tc>, window_params = [{transform_indices = @transform_0, window_bounds = array<i64: 8, 8>}, {transform_indices = @transform_1, window_bounds = array<i64: 8, 32>}]} {
    %c0 = arith.constant 0 : index
    %c0_0 = arith.constant 0 : index
    %0 = vector.load %arg1[%c0, %c0_0] : memref<8x8xf32, #tpu.memory_space<vmem>>, vector<8x8xf32>
    %1 = vector.shape_cast %0 : vector<8x8xf32> to vector<8x8x1xf32>
    %2 = vector.shape_cast %1 : vector<8x8x1xf32> to vector<8x8x1xf32>
    %3 = vector.broadcast %2 : vector<8x8x1xf32> to vector<8x8x2xf32>
    %4 = vector.shape_cast %3 : vector<8x8x2xf32> to vector<8x16xf32>
    %5 = tpu.concatenate %4, %4 in 1 : vector<8x16xf32>, vector<8x16xf32> -> vector<8x32xf32>
    %c0_1 = arith.constant 0 : index
    %c0_2 = arith.constant 0 : index
    %6 = vector.load %arg2[%c0_1, %c0_2] : memref<8x32xf32, #tpu.memory_space<vmem>>, vector<8x32xf32>
    tpu.vector_store %arg2[%c0_1, %c0_2], %5 {strides = array<i32>} : memref<8x32xf32, #tpu.memory_space<vmem>>, vector<8x32xf32>,
    return
  }
  func.func @transform_0(%arg0: i32) -> (i32, i32) {
    %c0_i32 = arith.constant 0 : i32
    %c0_i32_0 = arith.constant 0 : i32
    return %arg0, %c0_i32 : i32, i32
  }
  func.func @transform_1(%arg0: i32) -> (i32, i32) {
    %c0_i32 = arith.constant 0 : i32
    %c0_i32_0 = arith.constant 0 : i32
    return %arg0, %c0_i32 : i32, i32
  }
}

module attributes {stable_mosaic.version = 11 : i64} {
  func.func @_upsample_nhwc_kernel(%arg0: i32, %arg1: i32, %arg2: memref<1x16x16x4xf32, #tpu.memory_space<vmem>>, %arg3: memref<1x16x2x16x8xf32, #tpu.memory_space<vmem>>) attributes {dimension_semantics = [#tpu.dimension_semantics<parallel>, #tpu.dimension_semantics<parallel>], iteration_bounds = array<i64: 2, 1>, scalar_prefetch = 0 : i64, scratch_operands = 0 : i64, tpu.core_type = #tpu.core_type<tc>, window_params = [{transform_indices = @transform_0, window_bounds = array<i64: 1, 16, 16, 4>}, {transform_indices = @transform_1, window_bounds = array<i64: 1, 16, 2, 16, 8>}]} {
    %c0 = arith.constant 0 : index
    %c0_0 = arith.constant 0 : index
    %c0_1 = arith.constant 0 : index
    %c0_2 = arith.constant 0 : index
    %0 = vector.load %arg2[%c0, %c0_0, %c0_1, %c0_2] : memref<1x16x16x4xf32, #tpu.memory_space<vmem>>, vector<1x16x16x4xf32>
    %1 = vector.shape_cast %0 : vector<1x16x16x4xf32> to vector<16x16x4xf32>
    %2 = tpu.concatenate %1, %1 in 2 : vector<16x16x4xf32>, vector<16x16x4xf32> -> vector<16x16x8xf32>
    %3 = vector.shape_cast %2 : vector<16x16x8xf32> to vector<16x1x16x8xf32>
    %4 = vector.shape_cast %3 : vector<16x1x16x8xf32> to vector<16x1x16x8xf32>
    %5 = vector.broadcast %4 : vector<16x1x16x8xf32> to vector<16x2x16x8xf32>
    %c0_3 = arith.constant 0 : index
    %c0_4 = arith.constant 0 : index
    %c0_5 = arith.constant 0 : index
    %c0_6 = arith.constant 0 : index
    %c0_7 = arith.constant 0 : index
    %6 = vector.load %arg3[%c0_3, %c0_4, %c0_5, %c0_6, %c0_7] : memref<1x16x2x16x8xf32, #tpu.memory_space<vmem>>, vector<1x16x2x16x8xf32>
    %7 = vector.shape_cast %6 : vector<1x16x2x16x8xf32> to vector<16x2x16x8xf32>
    %8 = vector.shape_cast %5 : vector<16x2x16x8xf32> to vector<1x16x2x16x8xf32>
    tpu.vector_store %arg3[%c0_3, %c0_4, %c0_5, %c0_6, %c0_7], %8 {strides = array<i32>} : memref<1x16x2x16x8xf32, #tpu.memory_space<vmem>>, vector<1x16x2x16x8xf32>,
    return
  }
  func.func @transform_0(%arg0: i32, %arg1: i32) -> (i32, i32, i32, i32) {
    %c0_i32 = arith.constant 0 : i32
    %c0_i32_0 = arith.constant 0 : i32
    %c0_i32_1 = arith.constant 0 : i32
    return %arg0, %arg1, %c0_i32, %c0_i32_0 : i32, i32, i32, i32
  }
  func.func @transform_1(%arg0: i32, %arg1: i32) -> (i32, i32, i32, i32, i32) {
    %c0_i32 = arith.constant 0 : i32
    %c0_i32_0 = arith.constant 0 : i32
    %c0_i32_1 = arith.constant 0 : i32
    %c0_i32_2 = arith.constant 0 : i32
    return %arg0, %arg1, %c0_i32, %c0_i32_0, %c0_i32_1 : i32, i32, i32, i32, i32
  }
}

</mosaic_0001>

<llo_original>
// kernel: tpu_custom_call.1
$region0: #{tpu_custom_call.1}
  #allocation0 [shape = 'u32[]', space=smem, size = 0x4, offset = 0x4, fixed_abs, tag = 'smem constant byte address 0x4 - core index']
  #allocation1 [shape = 'u32[144,128]{1,0:T(1,128)}', space=vmem, size = 0x12000, scoped, tag = 'internal scratch']
  %s0 = inlined_call_operand.vmem [shape: f32[16,8], index: 0, kind: input, shape index: {}]
  %s1 = inlined_call_operand.hbm [shape: f32[16,32], index: 1, kind: output, shape index: {}]
  %s2 = sld [smem:[#allocation0]]
  $region37: #{tpu_custom_call.1} parent=0
    _
  %s4 = ssub.s32 1, %s2
  %s5 = scalar_select 0, %s4, %s2
  $region1: #{tpu_custom_call.1} parent=0
    #allocation2 [shape = 'u8[8192]{0}', space=vmem, size = 0x2000, scoped, tag = 'output window, operand 0']
    #allocation3 [shape = 's32[2]{0}', space=sflag, size = 0x8, scoped, tag = 'scoped memory for tpu_custom_call.1']
    %6 = vsyncpa [#allocation3], 0
    %s7 = scalar_lea.sflag [#allocation3], 1
    %8 = vsyncpa %s7, 0
    loop: start=0, step=1, limit=4
    $region2: #{tpu_custom_call.1} parent=1 // loop_pre_header
      _
    $region3: #{tpu_custom_call.1} parent=1 // loop_header
      %s10 = sphi 0, %s14
      %p11 = scmp.ge.s32.totalorder %s10, 4
      %s20 = sphi 0, %s22
      %s23 = sphi 0, %s20
      %s24 = sphi 0, %s23
      %s40 = sphi 0, %s24
      %s46 = sphi 0, %s48
      %s49 = sphi 0, %s46
      %s50 = sphi 0, %s49
      %s66 = sphi 0, %s50
    $region4: #{tpu_custom_call.1} parent=1 // loop_header_branch
      %13 = sbr.rel (%p11) target = $region8
    $region5: #{tpu_custom_call.1} parent=1 // loop_body
      %s15 = ssub.s32 %s10, 1
      %s16 = ssub.s32 %s10, 2
      %s17 = sadd.s32 %s10, 1
      %s18 = ssub.s32 %s10, %s17
      %p19 = scmp.eq.s32.totalorder %s18, 0
      %s21 = sadd.s32 %s20, 1
      %s22 = scalar_select %p19, %s20, %s21
      %p25 = pneg %p19
      %p26 = scmp.eq.s32.totalorder %s10, 1
      %p27 = por %p25, %p26
      %p28 = scmp.ne.s32.totalorder %s20, %s23
      %p29 = scmp.eq.s32.totalorder %s10, 0
      %p30 = por %p28, %p29
      %p31 = scmp.ne.s32.totalorder %s20, %s23
      %p32 = scmp.eq.s32.totalorder %s15, 1
      %p33 = por %p31, %p32
      %p34 = scmp.ne.s32.totalorder %s23, %s24
      %p35 = scmp.eq.s32.totalorder %s15, 0
      %p36 = por %p34, %p35
      %p37 = scmp.ne.s32.totalorder %s23, %s24
      %p38 = scmp.eq.s32.totalorder %s16, 1
      %p39 = por %p37, %p38
      %p41 = scmp.ne.s32.totalorder %s24, %s40
      %p42 = scmp.eq.s32.totalorder %s16, 0
      %p43 = por %p41, %p42
      %s44 = ssub.s32 %s10, %s17
      %p45 = scmp.eq.s32.totalorder %s44, 0
      %s47 = sadd.s32 %s46, 1
      %s48 = scalar_select %p45, %s46, %s47
      %p51 = pneg %p45
      %p52 = scmp.eq.s32.totalorder %s10, 1
      %p53 = por %p51, %p52
      %p54 = scmp.ne.s32.totalorder %s46, %s49
      %p55 = scmp.eq.s32.totalorder %s10, 0
      %p56 = por %p54, %p55
      %p57 = scmp.ne.s32.totalorder %s46, %s49
      %p58 = scmp.eq.s32.totalorder %s15, 1
      %p59 = por %p57, %p58
      %p60 = scmp.ne.s32.totalorder %s49, %s50
      %p61 = scmp.eq.s32.totalorder %s15, 0
      %p62 = por %p60, %p61
      %p63 = scmp.ne.s32.totalorder %s49, %s50
      %p64 = scmp.eq.s32.totalorder %s16, 1
      %p65 = por %p63, %p64
      %p67 = scmp.ne.s32.totalorder %s50, %s66
      %p68 = scmp.eq.s32.totalorder %s16, 0
      %p69 = por %p67, %p68
      %p70 = scmp.le.s32.totalorder 1, %s10
      %p71 = scmp.lt.s32.totalorder %s10, 3
      %p72 = pnand %p70, %p71
      %p73 = pneg %p72
      // Predicated region
      $region9: #{tpu_custom_call.1} parent=5 // pred_check
        _
      $region10: #{tpu_custom_call.1} parent=5 // pred_check_branch
        %75 = sbr.rel (%p72) target = $region12
      $region11: #{tpu_custom_call.1} parent=5 // pred_region
        %s76 = ssub.s32 %s10, 1
      $region12: #{tpu_custom_call.1} parent=5 // pred_fallthru
        _
      %p77 = scmp.lt.s32.totalorder %s10, 2
      // Predicated region
      $region13: #{tpu_custom_call.1} parent=5 // pred_check
        %p78 = pneg %p77
      $region14: #{tpu_custom_call.1} parent=5 // pred_check_branch
        %80 = sbr.rel (%p78) target = $region16
      $region15: #{tpu_custom_call.1} parent=5 // pred_region
        // Predicated region
        $region17: #{tpu_custom_call.1} parent=15 // pred_check
          %p81 = pneg %p30
        $region18: #{tpu_custom_call.1} parent=15 // pred_check_branch
          %83 = sbr.rel (%p81) target = $region20
        $region19: #{tpu_custom_call.1} parent=15 // pred_region
          %p84 = scmp.lt.s32.totalorder %s10, 1
          %s85 = scalar_select %p84, %s10, 1
          %s86 = smul.addr %s85, 8
          %s87 = scalar_lea.vmem %s0, %s86
        $region20: #{tpu_custom_call.1} parent=15 // pred_fallthru
          _
      $region16: #{tpu_custom_call.1} parent=5 // pred_fallthru
        _
      %p88 = scmp.le.s32.totalorder 1, %s10
      %p89 = scmp.lt.s32.totalorder %s10, 3
      %p90 = pnand %p88, %p89
      %p91 = pneg %p90
      // Predicated region
      $region21: #{tpu_custom_call.1} parent=5 // pred_check
        _
      $region22: #{tpu_custom_call.1} parent=5 // pred_check_branch
        %93 = sbr.rel (%p90) target = $region24
      $region23: #{tpu_custom_call.1} parent=5 // pred_region
        %s94 = ssub.s32 %s10, 1
        %p95 = scmp.lt.s32.totalorder %s15, 1
        %s96 = scalar_select %p95, %s15, 1
        %s97 = smul.addr %s96, 8
        %s98 = scalar_lea.vmem %s0, %s97
        %p99 = pneg %p36
        %p100 = pneg %p33
        %p101 = pneg %p62
        %p102 = pneg %p59
        %s103 = sand.u32 %s49, 1
        %s104 = scalar_lea.sflag [#allocation3], %s103
        %s105 = sand.u32 %s49, 1
        %s106 = smul.addr %s105, 8
        %s107 = scalar_lea.vmem [#allocation2], %s106
        %p108 = scmp.lt.s32.totalorder %s15, 1
        %s109 = scalar_select %p108, %s15, 1
        %s110 = smul.addr %s109, 8
        %s111 = scalar_lea.vmem %s0, %s110
        %v112 = vld [vmem:[%s111] sm:$0xff]
        %v113 = vlaneseq
        %v114 = vshrl.u32 %v113, 7
        %v115 = vsub.s32 0, %v114
        %v116 = vrot.slane %v112, %v115
        %118 = vbcast.lane.b32.xlu0 %v116, 256
        %v119 = vpop.permute.xlu0 %118
        %v120 = vlaneseq
        %v121 = vshrl.u32 %v120, 7
        %v122 = vsub.s32 1, %v121
        %v123 = vrot.slane %v112, %v122
        %125 = vbcast.lane.b32.xlu0 %v123, 256
        %v126 = vpop.permute.xlu0 %125
        %v127 = vlaneseq
        %v128 = vshrl.u32 %v127, 7
        %v129 = vsub.s32 2, %v128
        %v130 = vrot.slane %v112, %v129
        %132 = vbcast.lane.b32.xlu0 %v130, 256
        %v133 = vpop.permute.xlu0 %132
        %v134 = vlaneseq
        %v135 = vshrl.u32 %v134, 7
        %v136 = vsub.s32 3, %v135
        %v137 = vrot.slane %v112, %v136
        %139 = vbcast.lane.b32.xlu0 %v137, 256
        %v140 = vpop.permute.xlu0 %139
        %v141 = vlaneseq
        %v142 = vshrl.u32 %v141, 7
        %v143 = vsub.s32 4, %v142
        %v144 = vrot.slane %v112, %v143
        %146 = vbcast.lane.b32.xlu0 %v144, 256
        %v147 = vpop.permute.xlu0 %146
        %v148 = vlaneseq
        %v149 = vshrl.u32 %v148, 7
        %v150 = vsub.s32 5, %v149
        %v151 = vrot.slane %v112, %v150
        %153 = vbcast.lane.b32.xlu0 %v151, 256
        %v154 = vpop.permute.xlu0 %153
        %v155 = vlaneseq
        %v156 = vshrl.u32 %v155, 7
        %v157 = vsub.s32 6, %v156
        %v158 = vrot.slane %v112, %v157
        %160 = vbcast.lane.b32.xlu0 %v158, 256
        %v161 = vpop.permute.xlu0 %160
        %v162 = vlaneseq
        %v163 = vshrl.u32 %v162, 7
        %v164 = vsub.s32 7, %v163
        %v165 = vrot.slane %v112, %v164
        %167 = vbcast.lane.b32.xlu0 %v165, 256
        %v168 = vpop.permute.xlu0 %167
        %v169 = vcombine.low %v119, %v133
        %v170 = vcombine.high %v119, %v133
        %v172 = vunpack.c.l.s4 1983009808
        %v173 = vunpack.c.0.s8 %v172
        %v174 = vlaneseq
        %v175 = vshrl.u32 %v174, 7
        %v176 = vsub.s32 %v173, %v175
        %v177 = vrot.slane %v169, %v176
        %v179 = vunpack.c.l.s4 1983009808
        %v180 = vunpack.c.0.s8 %v179
        %v181 = vlaneseq
        %v182 = vshrl.u32 %v181, 7
        %v183 = vsub.s32 %v180, %v182
        %v184 = vrot.slane %v170, %v183
        %v185 = vcombine.low %v126, %v140
        %v186 = vcombine.high %v126, %v140
        %v188 = vunpack.c.l.s4 1983009808
        %v189 = vunpack.c.0.s8 %v188
        %v190 = vlaneseq
        %v191 = vshrl.u32 %v190, 7
        %v192 = vsub.s32 %v189, %v191
        %v193 = vrot.slane %v185, %v192
        %v195 = vunpack.c.l.s4 1983009808
        %v196 = vunpack.c.0.s8 %v195
        %v197 = vlaneseq
        %v198 = vshrl.u32 %v197, 7
        %v199 = vsub.s32 %v196, %v198
        %v200 = vrot.slane %v186, %v199
        %v201 = vcombine.low %v147, %v161
        %v202 = vcombine.high %v147, %v161
        %v204 = vunpack.c.l.s4 1983009808
        %v205 = vunpack.c.0.s8 %v204
        %v206 = vlaneseq
        %v207 = vshrl.u32 %v206, 7
        %v208 = vsub.s32 %v205, %v207
        %v209 = vrot.slane %v201, %v208
        %v211 = vunpack.c.l.s4 1983009808
        %v212 = vunpack.c.0.s8 %v211
        %v213 = vlaneseq
        %v214 = vshrl.u32 %v213, 7
        %v215 = vsub.s32 %v212, %v214
        %v216 = vrot.slane %v202, %v215
        %v217 = vcombine.low %v154, %v168
        %v218 = vcombine.high %v154, %v168
        %v220 = vunpack.c.l.s4 1983009808
        %v221 = vunpack.c.0.s8 %v220
        %v222 = vlaneseq
        %v223 = vshrl.u32 %v222, 7
        %v224 = vsub.s32 %v221, %v223
        %v225 = vrot.slane %v217, %v224
        %v227 = vunpack.c.l.s4 1983009808
        %v228 = vunpack.c.0.s8 %v227
        %v229 = vlaneseq
        %v230 = vshrl.u32 %v229, 7
        %v231 = vsub.s32 %v228, %v230
        %v232 = vrot.slane %v218, %v231
        %v233 = vcombine.low %v177, %v193
        %v234 = vcombine.high %v177, %v193
        %v236 = vunpack.c.l.s4 1934713408
        %v237 = vunpack.c.0.s8 %v236
        %v238 = vlaneseq
        %v239 = vshrl.u32 %v238, 7
        %v240 = vsub.s32 %v237, %v239
        %v241 = vrot.slane %v233, %v240
        %v243 = vunpack.c.l.s4 1934713408
        %v244 = vunpack.c.0.s8 %v243
        %v245 = vlaneseq
        %v246 = vshrl.u32 %v245, 7
        %v247 = vsub.s32 %v244, %v246
        %v248 = vrot.slane %v234, %v247
        %v249 = vcombine.low %v184, %v200
        %v250 = vcombine.high %v184, %v200
        %v252 = vunpack.c.l.s4 1934713408
        %v253 = vunpack.c.0.s8 %v252
        %v254 = vlaneseq
        %v255 = vshrl.u32 %v254, 7
        %v256 = vsub.s32 %v253, %v255
        %v257 = vrot.slane %v249, %v256
        %v259 = vunpack.c.l.s4 1934713408
        %v260 = vunpack.c.0.s8 %v259
        %v261 = vlaneseq
        %v262 = vshrl.u32 %v261, 7
        %v263 = vsub.s32 %v260, %v262
        %v264 = vrot.slane %v250, %v263
        %v265 = vcombine.low %v209, %v225
        %v266 = vcombine.high %v209, %v225
        %v268 = vunpack.c.l.s4 1934713408
        %v269 = vunpack.c.0.s8 %v268
        %v270 = vlaneseq
        %v271 = vshrl.u32 %v270, 7
        %v272 = vsub.s32 %v269, %v271
        %v273 = vrot.slane %v265, %v272
        %v275 = vunpack.c.l.s4 1934713408
        %v276 = vunpack.c.0.s8 %v275
        %v277 = vlaneseq
        %v278 = vshrl.u32 %v277, 7
        %v279 = vsub.s32 %v276, %v278
        %v280 = vrot.slane %v266, %v279
        %v281 = vcombine.low %v216, %v232
        %v282 = vcombine.high %v216, %v232
        %v284 = vunpack.c.l.s4 1934713408
        %v285 = vunpack.c.0.s8 %v284
        %v286 = vlaneseq
        %v287 = vshrl.u32 %v286, 7
        %v288 = vsub.s32 %v285, %v287
        %v289 = vrot.slane %v281, %v288
        %v291 = vunpack.c.l.s4 1934713408
        %v292 = vunpack.c.0.s8 %v291
        %v293 = vlaneseq
        %v294 = vshrl.u32 %v293, 7
        %v295 = vsub.s32 %v292, %v294
        %v296 = vrot.slane %v282, %v295
        %v297 = vcombine.low %v241, %v273
        %v298 = vcombine.high %v241, %v273
        %v299 = vcombine.low %v248, %v280
        %v300 = vcombine.high %v248, %v280
        %v301 = vcombine.low %v257, %v289
        %v302 = vcombine.high %v257, %v289
        %v303 = vcombine.low %v264, %v296
        %v304 = vcombine.high %v264, %v296
        %306 = vrot.lane.b32.xlu0 %v298, 2
        %v307 = vpop.permute.xlu0 %306
        %310 = vrot.lane.b32.xlu0 %v299, 4
        %v311 = vpop.permute.xlu0 %310
        %314 = vrot.lane.b32.xlu0 %v300, 6
        %v315 = vpop.permute.xlu0 %314
        %318 = vrot.lane.b32.xlu0 %v301, 8
        %v319 = vpop.permute.xlu0 %318
        %322 = vrot.lane.b32.xlu0 %v302, 10
        %v323 = vpop.permute.xlu0 %322
        %326 = vrot.lane.b32.xlu0 %v303, 12
        %v327 = vpop.permute.xlu0 %326
        %330 = vrot.lane.b32.xlu0 %v304, 14
        %v331 = vpop.permute.xlu0 %330
        %vm333 = vcmask 15360
        %v334 = vsel %vm333, %v297, %v307
        %vm335 = vcmask 31744
        %v336 = vsel %vm335, %v334, %v311
        %vm337 = vcmask 48128
        %v338 = vsel %vm337, %v336, %v315
        %vm339 = vcmask 64512
        %v340 = vsel %vm339, %v338, %v319
        %vm341 = vcmask 80896
        %v342 = vsel %vm341, %v340, %v323
        %vm343 = vcmask 97280
        %v344 = vsel %vm343, %v342, %v327
        %vm345 = vcmask 113664
        %v346 = vsel %vm345, %v344, %v331
        %348 = vrot.lane.b32.xlu0 %v346, 16
        %v349 = vpop.permute.xlu0 %348
        %vm351 = vcmask 130048
        %v352 = vsel %vm351, %v346, %v349
        %vm353 = vcmask 261120
        %354 = vst.msk [vmem:[%s107] sm:$0xff] %vm353, %v352
        %s355 = sand.u32 %s49, 1
        %s356 = scalar_lea.sflag [#allocation3], %s355
        %s357 = sand.u32 %s49, 1
        %s358 = smul.addr %s357, 8
        %s359 = scalar_lea.vmem [#allocation2], %s358
        // Predicated region
        $region25: #{tpu_custom_call.1} parent=23 // pred_check
          %p360 = pneg %p59
        $region26: #{tpu_custom_call.1} parent=23 // pred_check_branch
          %362 = sbr.rel (%p360) target = $region28
        $region27: #{tpu_custom_call.1} parent=23 // pred_region
          %s364 = ssub.s32 128, 128
          %365 = vsyncadd %s356, %s364
          %s366 = smul.addr %s15, 128
          %s367 = scalar_lea.hbm %s1, %s366
          %s369 = sshll.u32 %s359, 4
          %s370 = int_to_ptr.vmem [resolvable:$true] %s369
          %372 = dma.vmem_to_hbm [thread:$0]  %s370, 128, %s367, %s356
        $region28: #{tpu_custom_call.1} parent=23 // pred_fallthru
          _
      $region24: #{tpu_custom_call.1} parent=5 // pred_fallthru
        _
      %p373 = scmp.le.s32.totalorder 2, %s10
      // Predicated region
      $region29: #{tpu_custom_call.1} parent=5 // pred_check
        %p374 = pneg %p373
      $region30: #{tpu_custom_call.1} parent=5 // pred_check_branch
        %376 = sbr.rel (%p374) target = $region32
      $region31: #{tpu_custom_call.1} parent=5 // pred_region
        %s377 = ssub.s32 %s10, 2
        // Predicated region
        $region33: #{tpu_custom_call.1} parent=31 // pred_check
          %p378 = pneg %p65
        $region34: #{tpu_custom_call.1} parent=31 // pred_check_branch
          %380 = sbr.rel (%p378) target = $region36
        $region35: #{tpu_custom_call.1} parent=31 // pred_region
          %s381 = sand.u32 %s50, 1
          %s382 = scalar_lea.sflag [#allocation3], %s381
          %s383 = sand.u32 %s50, 1
          %s384 = smul.addr %s383, 8
          %s385 = scalar_lea.vmem [#allocation2], %s384
          %386 = dma.done %s382, 128
        $region36: #{tpu_custom_call.1} parent=31 // pred_fallthru
          _
      $region32: #{tpu_custom_call.1} parent=5 // pred_fallthru
        _
    $region6: #{tpu_custom_call.1} parent=1 // loop_footer
      %s14 = sadd.s32 1, %s10
    $region7: #{tpu_custom_call.1} parent=1 // loop_footer_branch
      %9 = sbr.rel target = $region3
    $region8: #{tpu_custom_call.1} parent=1 // loop_exit
      _
    %387 = vsyncpa [#allocation3], 1
    %s388 = scalar_lea.sflag [#allocation3], 1
    %389 = vsyncpa %s388, 1

// kernel: tpu_custom_call.1
$region0: #{tpu_custom_call.1}
  #allocation0 [shape = 'u32[]', space=smem, size = 0x4, offset = 0x4, fixed_abs, tag = 'smem constant byte address 0x4 - core index']
  #allocation1 [shape = 'u32[144,128]{1,0:T(1,128)}', space=vmem, size = 0x12000, scoped, tag = 'internal scratch']
  %s0 = inlined_call_operand.vmem [shape: f32[2,16,16,4], index: 0, kind: input, shape index: {}]
  %s1 = inlined_call_operand.vmem [shape: f32[2,16,2,16,8], index: 1, kind: output, shape index: {}]
  %s2 = sld [smem:[#allocation0]]
  $region37: #{tpu_custom_call.1} parent=0
    _
  %s4 = ssub.s32 1, %s2
  %s5 = scalar_select 0, %s4, %s2
  loop: start=0, step=1, limit=4
  $region2: #{tpu_custom_call.1} parent=0 // loop_pre_header
    _
  $region3: #{tpu_custom_call.1} parent=0 // loop_header
    %s7 = sphi 0, %s11
    %p8 = scmp.ge.s32.totalorder %s7, 4
    %s14 = sphi 0, %s26
    %s15 = sphi 0, %s22
    %s16 = sphi 0, %s14
    %s17 = sphi 0, %s15
    %s18 = sphi 0, %s16
    %s19 = sphi 0, %s17
    %s31 = sphi 0, %s33
    %s34 = sphi 0, %s31
    %s35 = sphi 0, %s34
    %s51 = sphi 0, %s35
    %s59 = sphi 0, %s61
    %s62 = sphi 0, %s59
    %s63 = sphi 0, %s62
    %s79 = sphi 0, %s63
  $region4: #{tpu_custom_call.1} parent=0 // loop_header_branch
    %10 = sbr.rel (%p8) target = $region8
  $region5: #{tpu_custom_call.1} parent=0 // loop_body
    %s12 = ssub.s32 %s7, 1
    %s13 = ssub.s32 %s7, 2
    %s20 = sadd.s32 1, %s15
    %p21 = scmp.ge.s32.totalorder %s20, 1
    %s22 = scalar_select %p21, 0, %s20
    %s23 = sadd.s32 1, %s14
    %s24 = scalar_select %p21, %s23, %s14
    %p25 = scmp.ge.s32.totalorder %s24, 2
    %s26 = scalar_select %p25, 0, %s24
    %s27 = ssub.s32 %s14, %s26
    %s28 = ssub.s32 %s15, %s22
    %s29 = sor.u32 %s27, %s28
    %p30 = scmp.eq.s32.totalorder %s29, 0
    %s32 = sadd.s32 %s31, 1
    %s33 = scalar_select %p30, %s31, %s32
    %p36 = pneg %p30
    %p37 = scmp.eq.s32.totalorder %s7, 1
    %p38 = por %p36, %p37
    %p39 = scmp.ne.s32.totalorder %s31, %s34
    %p40 = scmp.eq.s32.totalorder %s7, 0
    %p41 = por %p39, %p40
    %p42 = scmp.ne.s32.totalorder %s31, %s34
    %p43 = scmp.eq.s32.totalorder %s12, 1
    %p44 = por %p42, %p43
    %p45 = scmp.ne.s32.totalorder %s34, %s35
    %p46 = scmp.eq.s32.totalorder %s12, 0
    %p47 = por %p45, %p46
    %p48 = scmp.ne.s32.totalorder %s34, %s35
    %p49 = scmp.eq.s32.totalorder %s13, 1
    %p50 = por %p48, %p49
    %p52 = scmp.ne.s32.totalorder %s35, %s51
    %p53 = scmp.eq.s32.totalorder %s13, 0
    %p54 = por %p52, %p53
    %s55 = ssub.s32 %s14, %s26
    %s56 = ssub.s32 %s15, %s22
    %s57 = sor.u32 %s55, %s56
    %p58 = scmp.eq.s32.totalorder %s57, 0
    %s60 = sadd.s32 %s59, 1
    %s61 = scalar_select %p58, %s59, %s60
    %p64 = pneg %p58
    %p65 = scmp.eq.s32.totalorder %s7, 1
    %p66 = por %p64, %p65
    %p67 = scmp.ne.s32.totalorder %s59, %s62
    %p68 = scmp.eq.s32.totalorder %s7, 0
    %p69 = por %p67, %p68
    %p70 = scmp.ne.s32.totalorder %s59, %s62
    %p71 = scmp.eq.s32.totalorder %s12, 1
    %p72 = por %p70, %p71
    %p73 = scmp.ne.s32.totalorder %s62, %s63
    %p74 = scmp.eq.s32.totalorder %s12, 0
    %p75 = por %p73, %p74
    %p76 = scmp.ne.s32.totalorder %s62, %s63
    %p77 = scmp.eq.s32.totalorder %s13, 1
    %p78 = por %p76, %p77
    %p80 = scmp.ne.s32.totalorder %s63, %s79
    %p81 = scmp.eq.s32.totalorder %s13, 0
    %p82 = por %p80, %p81
    %p83 = scmp.le.s32.totalorder 1, %s7
    %p84 = scmp.lt.s32.totalorder %s7, 3
    %p85 = pnand %p83, %p84
    %p86 = pneg %p85
    // Predicated region
    $region9: #{tpu_custom_call.1} parent=5 // pred_check
      _
    $region10: #{tpu_custom_call.1} parent=5 // pred_check_branch
      %88 = sbr.rel (%p85) target = $region12
    $region11: #{tpu_custom_call.1} parent=5 // pred_region
      %s89 = ssub.s32 %s7, 1
    $region12: #{tpu_custom_call.1} parent=5 // pred_fallthru
      _
    %p90 = scmp.lt.s32.totalorder %s7, 2
    // Predicated region
    $region13: #{tpu_custom_call.1} parent=5 // pred_check
      %p91 = pneg %p90
    $region14: #{tpu_custom_call.1} parent=5 // pred_check_branch
      %93 = sbr.rel (%p91) target = $region16
    $region15: #{tpu_custom_call.1} parent=5 // pred_region
      // Predicated region
      $region17: #{tpu_custom_call.1} parent=15 // pred_check
        %p94 = pneg %p41
      $region18: #{tpu_custom_call.1} parent=15 // pred_check_branch
        %96 = sbr.rel (%p94) target = $region20
      $region19: #{tpu_custom_call.1} parent=15 // pred_region
        %s97 = smul.u32 16, %s15
        %p98 = scmp.lt.s32.totalorder %s14, 1
        %s99 = scalar_select %p98, %s14, 1
        %p100 = scmp.lt.s32.totalorder %s97, 15
        %s101 = scalar_select %p100, %s97, 15
        %s102 = smul.addr %s101, 2
        %s103 = smul.addr %s99, 32
        %s104 = sadd.s32 %s102, %s103
        %s105 = smul.addr %s104, 8
        %s106 = scalar_lea.vmem %s0, %s105
        %s107 = smul.u32 16, %s15
      $region20: #{tpu_custom_call.1} parent=15 // pred_fallthru
        _
    $region16: #{tpu_custom_call.1} parent=5 // pred_fallthru
      _
    %p108 = scmp.le.s32.totalorder 1, %s7
    %p109 = scmp.lt.s32.totalorder %s7, 3
    %p110 = pnand %p108, %p109
    %p111 = pneg %p110
    // Predicated region
    $region21: #{tpu_custom_call.1} parent=5 // pred_check
      _
    $region22: #{tpu_custom_call.1} parent=5 // pred_check_branch
      %113 = sbr.rel (%p110) target = $region24
    $region23: #{tpu_custom_call.1} parent=5 // pred_region
      %s114 = ssub.s32 %s7, 1
      %s115 = smul.u32 16, %s17
      %p116 = scmp.lt.s32.totalorder %s16, 1
      %s117 = scalar_select %p116, %s16, 1
      %p118 = scmp.lt.s32.totalorder %s115, 15
      %s119 = scalar_select %p118, %s115, 15
      %s120 = smul.addr %s119, 2
      %s121 = smul.addr %s117, 32
      %s122 = sadd.s32 %s120, %s121
      %s123 = smul.addr %s122, 8
      %s124 = scalar_lea.vmem %s0, %s123
      %p125 = pneg %p47
      %p126 = pneg %p44
      %p127 = pneg %p75
      %p128 = pneg %p72
      %s129 = smul.u32 16, %s17
      %p130 = scmp.lt.s32.totalorder %s16, 1
      %s131 = scalar_select %p130, %s16, 1
      %p132 = scmp.lt.s32.totalorder %s129, 15
      %s133 = scalar_select %p132, %s129, 15
      %s134 = smul.addr %s133, 4
      %s135 = smul.addr %s131, 64
      %s136 = sadd.s32 %s134, %s135
      %s137 = smul.addr %s136, 8
      %s138 = scalar_lea.vmem %s1, %s137
      %s139 = smul.u32 16, %s17
      %p140 = scmp.lt.s32.totalorder %s16, 1
      %s141 = scalar_select %p140, %s16, 1
      %p142 = scmp.lt.s32.totalorder %s139, 15
      %s143 = scalar_select %p142, %s139, 15
      %s144 = smul.addr %s143, 2
      %s145 = smul.addr %s141, 32
      %s146 = sadd.s32 %s144, %s145
      %s147 = smul.addr %s146, 8
      %s148 = scalar_lea.vmem %s0, %s147
      %s149 = smul.u32 16, %s17
      %s150 = smul.u32 16, %s17
      %p151 = scmp.lt.s32.totalorder %s16, 1
      %s152 = scalar_select %p151, %s16, 1
      %p153 = scmp.lt.s32.totalorder %s150, 15
      %s154 = scalar_select %p153, %s150, 15
      %s155 = smul.addr %s154, 4
      %s156 = smul.addr %s152, 64
      %s157 = sadd.s32 %s155, %s156
      %s158 = smul.addr %s157, 8
      %s159 = scalar_lea.vmem %s1, %s158
      %s160 = smul.u32 16, %s17
      %v161 = vld [vmem:[%s148] sm:$0xff]
      %v162 = vld [vmem:[%s148 + $0x8] sm:$0xff]
      %v163 = vld [vmem:[%s148 + $0x10] sm:$0xff]
      %v164 = vld [vmem:[%s148 + $0x18] sm:$0xff]
      %v165 = vld [vmem:[%s148 + $0x20] sm:$0xff]
      %v166 = vld [vmem:[%s148 + $0x28] sm:$0xff]
      %v167 = vld [vmem:[%s148 + $0x30] sm:$0xff]
      %v168 = vld [vmem:[%s148 + $0x38] sm:$0xff]
      %v169 = vld [vmem:[%s148 + $0x40] sm:$0xff]
      %v170 = vld [vmem:[%s148 + $0x48] sm:$0xff]
      %v171 = vld [vmem:[%s148 + $0x50] sm:$0xff]
      %v172 = vld [vmem:[%s148 + $0x58] sm:$0xff]
      %v173 = vld [vmem:[%s148 + $0x60] sm:$0xff]
      %v174 = vld [vmem:[%s148 + $0x68] sm:$0xff]
      %v175 = vld [vmem:[%s148 + $0x70] sm:$0xff]
      %v176 = vld [vmem:[%s148 + $0x78] sm:$0xff]
      %v177 = vld [vmem:[%s148 + $0x80] sm:$0xff]
      %v178 = vld [vmem:[%s148 + $0x88] sm:$0xff]
      %v179 = vld [vmem:[%s148 + $0x90] sm:$0xff]
      %v180 = vld [vmem:[%s148 + $0x98] sm:$0xff]
      %v181 = vld [vmem:[%s148 + $0xa0] sm:$0xff]
      %v182 = vld [vmem:[%s148 + $0xa8] sm:$0xff]
      %v183 = vld [vmem:[%s148 + $0xb0] sm:$0xff]
      %v184 = vld [vmem:[%s148 + $0xb8] sm:$0xff]
      %v185 = vld [vmem:[%s148 + $0xc0] sm:$0xff]
      %v186 = vld [vmem:[%s148 + $0xc8] sm:$0xff]
      %v187 = vld [vmem:[%s148 + $0xd0] sm:$0xff]
      %v188 = vld [vmem:[%s148 + $0xd8] sm:$0xff]
      %v189 = vld [vmem:[%s148 + $0xe0] sm:$0xff]
      %v190 = vld [vmem:[%s148 + $0xe8] sm:$0xff]
      %v191 = vld [vmem:[%s148 + $0xf0] sm:$0xff]
      %v192 = vld [vmem:[%s148 + $0xf8] sm:$0xff]
      %225 = vrot.lane.b32.xlu0 %v161, 4
      %v226 = vpop.permute.xlu0 %225
      %227 = vrot.lane.b32.xlu0 %v162, 4
      %v228 = vpop.permute.xlu0 %227
      %229 = vrot.lane.b32.xlu0 %v163, 4
      %v230 = vpop.permute.xlu0 %229
      %231 = vrot.lane.b32.xlu0 %v164, 4
      %v232 = vpop.permute.xlu0 %231
      %233 = vrot.lane.b32.xlu0 %v165, 4
      %v234 = vpop.permute.xlu0 %233
      %235 = vrot.lane.b32.xlu0 %v166, 4
      %v236 = vpop.permute.xlu0 %235
      %237 = vrot.lane.b32.xlu0 %v167, 4
      %v238 = vpop.permute.xlu0 %237
      %239 = vrot.lane.b32.xlu0 %v168, 4
      %v240 = vpop.permute.xlu0 %239
      %241 = vrot.lane.b32.xlu0 %v169, 4
      %v242 = vpop.permute.xlu0 %241
      %243 = vrot.lane.b32.xlu0 %v170, 4
      %v244 = vpop.permute.xlu0 %243
      %245 = vrot.lane.b32.xlu0 %v171, 4
      %v246 = vpop.permute.xlu0 %245
      %247 = vrot.lane.b32.xlu0 %v172, 4
      %v248 = vpop.permute.xlu0 %247
      %249 = vrot.lane.b32.xlu0 %v173, 4
      %v250 = vpop.permute.xlu0 %249
      %251 = vrot.lane.b32.xlu0 %v174, 4
      %v252 = vpop.permute.xlu0 %251
      %253 = vrot.lane.b32.xlu0 %v175, 4
      %v254 = vpop.permute.xlu0 %253
      %255 = vrot.lane.b32.xlu0 %v176, 4
      %v256 = vpop.permute.xlu0 %255
      %257 = vrot.lane.b32.xlu0 %v177, 4
      %v258 = vpop.permute.xlu0 %257
      %259 = vrot.lane.b32.xlu0 %v178, 4
      %v260 = vpop.permute.xlu0 %259
      %261 = vrot.lane.b32.xlu0 %v179, 4
      %v262 = vpop.permute.xlu0 %261
      %263 = vrot.lane.b32.xlu0 %v180, 4
      %v264 = vpop.permute.xlu0 %263
      %265 = vrot.lane.b32.xlu0 %v181, 4
      %v266 = vpop.permute.xlu0 %265
      %267 = vrot.lane.b32.xlu0 %v182, 4
      %v268 = vpop.permute.xlu0 %267
      %269 = vrot.lane.b32.xlu0 %v183, 4
      %v270 = vpop.permute.xlu0 %269
      %271 = vrot.lane.b32.xlu0 %v184, 4
      %v272 = vpop.permute.xlu0 %271
      %273 = vrot.lane.b32.xlu0 %v185, 4
      %v274 = vpop.permute.xlu0 %273
      %275 = vrot.lane.b32.xlu0 %v186, 4
      %v276 = vpop.permute.xlu0 %275
      %277 = vrot.lane.b32.xlu0 %v187, 4
      %v278 = vpop.permute.xlu0 %277
      %279 = vrot.lane.b32.xlu0 %v188, 4
      %v280 = vpop.permute.xlu0 %279
      %281 = vrot.lane.b32.xlu0 %v189, 4
      %v282 = vpop.permute.xlu0 %281
      %283 = vrot.lane.b32.xlu0 %v190, 4
      %v284 = vpop.permute.xlu0 %283
      %285 = vrot.lane.b32.xlu0 %v191, 4
      %v286 = vpop.permute.xlu0 %285
      %287 = vrot.lane.b32.xlu0 %v192, 4
      %v288 = vpop.permute.xlu0 %287
      %vm321 = vcmask 31744
      %v322 = vsel %vm321, %v161, %v226
      %v323 = vsel %vm321, %v162, %v228
      %v324 = vsel %vm321, %v163, %v230
      %v325 = vsel %vm321, %v164, %v232
      %v326 = vsel %vm321, %v165, %v234
      %v327 = vsel %vm321, %v166, %v236
      %v328 = vsel %vm321, %v167, %v238
      %v329 = vsel %vm321, %v168, %v240
      %v330 = vsel %vm321, %v169, %v242
      %v331 = vsel %vm321, %v170, %v244
      %v332 = vsel %vm321, %v171, %v246
      %v333 = vsel %vm321, %v172, %v248
      %v334 = vsel %vm321, %v173, %v250
      %v335 = vsel %vm321, %v174, %v252
      %v336 = vsel %vm321, %v175, %v254
      %v337 = vsel %vm321, %v176, %v256
      %v338 = vsel %vm321, %v177, %v258
      %v339 = vsel %vm321, %v178, %v260
      %v340 = vsel %vm321, %v179, %v262
      %v341 = vsel %vm321, %v180, %v264
      %v342 = vsel %vm321, %v181, %v266
      %v343 = vsel %vm321, %v182, %v268
      %v344 = vsel %vm321, %v183, %v270
      %v345 = vsel %vm321, %v184, %v272
      %v346 = vsel %vm321, %v185, %v274
      %v347 = vsel %vm321, %v186, %v276
      %v348 = vsel %vm321, %v187, %v278
      %v349 = vsel %vm321, %v188, %v280
      %v350 = vsel %vm321, %v189, %v282
      %v351 = vsel %vm321, %v190, %v284
      %v352 = vsel %vm321, %v191, %v286
      %v353 = vsel %vm321, %v192, %v288
      %vm354 = vcmask 64512
      %355 = vst.msk [vmem:[%s159] sm:$0xff] %vm354, %v322
      %356 = vst.msk [vmem:[%s159 + $0x8] sm:$0xff] %vm354, %v323
      %357 = vst.msk [vmem:[%s159 + $0x10] sm:$0xff] %vm354, %v322
      %358 = vst.msk [vmem:[%s159 + $0x18] sm:$0xff] %vm354, %v323
      %359 = vst.msk [vmem:[%s159 + $0x20] sm:$0xff] %vm354, %v324
      %360 = vst.msk [vmem:[%s159 + $0x28] sm:$0xff] %vm354, %v325
      %361 = vst.msk [vmem:[%s159 + $0x30] sm:$0xff] %vm354, %v324
      %362 = vst.msk [vmem:[%s159 + $0x38] sm:$0xff] %vm354, %v325
      %363 = vst.msk [vmem:[%s159 + $0x40] sm:$0xff] %vm354, %v326
      %364 = vst.msk [vmem:[%s159 + $0x48] sm:$0xff] %vm354, %v327
      %365 = vst.msk [vmem:[%s159 + $0x50] sm:$0xff] %vm354, %v326
      %366 = vst.msk [vmem:[%s159 + $0x58] sm:$0xff] %vm354, %v327
      %367 = vst.msk [vmem:[%s159 + $0x60] sm:$0xff] %vm354, %v328
      %368 = vst.msk [vmem:[%s159 + $0x68] sm:$0xff] %vm354, %v329
      %369 = vst.msk [vmem:[%s159 + $0x70] sm:$0xff] %vm354, %v328
      %370 = vst.msk [vmem:[%s159 + $0x78] sm:$0xff] %vm354, %v329
      %371 = vst.msk [vmem:[%s159 + $0x80] sm:$0xff] %vm354, %v330
      %372 = vst.msk [vmem:[%s159 + $0x88] sm:$0xff] %vm354, %v331
      %373 = vst.msk [vmem:[%s159 + $0x90] sm:$0xff] %vm354, %v330
      %374 = vst.msk [vmem:[%s159 + $0x98] sm:$0xff] %vm354, %v331
      %375 = vst.msk [vmem:[%s159 + $0xa0] sm:$0xff] %vm354, %v332
      %376 = vst.msk [vmem:[%s159 + $0xa8] sm:$0xff] %vm354, %v333
      %377 = vst.msk [vmem:[%s159 + $0xb0] sm:$0xff] %vm354, %v332
      %378 = vst.msk [vmem:[%s159 + $0xb8] sm:$0xff] %vm354, %v333
      %379 = vst.msk [vmem:[%s159 + $0xc0] sm:$0xff] %vm354, %v334
      %380 = vst.msk [vmem:[%s159 + $0xc8] sm:$0xff] %vm354, %v335
      %381 = vst.msk [vmem:[%s159 + $0xd0] sm:$0xff] %vm354, %v334
      %382 = vst.msk [vmem:[%s159 + $0xd8] sm:$0xff] %vm354, %v335
      %383 = vst.msk [vmem:[%s159 + $0xe0] sm:$0xff] %vm354, %v336
      %384 = vst.msk [vmem:[%s159 + $0xe8] sm:$0xff] %vm354, %v337
      %385 = vst.msk [vmem:[%s159 + $0xf0] sm:$0xff] %vm354, %v336
      %386 = vst.msk [vmem:[%s159 + $0xf8] sm:$0xff] %vm354, %v337
      %387 = vst.msk [vmem:[%s159 + $0x100] sm:$0xff] %vm354, %v338
      %388 = vst.msk [vmem:[%s159 + $0x108] sm:$0xff] %vm354, %v339
      %389 = vst.msk [vmem:[%s159 + $0x110] sm:$0xff] %vm354, %v338
      %390 = vst.msk [vmem:[%s159 + $0x118] sm:$0xff] %vm354, %v339
      %391 = vst.msk [vmem:[%s159 + $0x120] sm:$0xff] %vm354, %v340
      %392 = vst.msk [vmem:[%s159 + $0x128] sm:$0xff] %vm354, %v341
      %393 = vst.msk [vmem:[%s159 + $0x130] sm:$0xff] %vm354, %v340
      %394 = vst.msk [vmem:[%s159 + $0x138] sm:$0xff] %vm354, %v341
      %395 = vst.msk [vmem:[%s159 + $0x140] sm:$0xff] %vm354, %v342
      %396 = vst.msk [vmem:[%s159 + $0x148] sm:$0xff] %vm354, %v343
      %397 = vst.msk [vmem:[%s159 + $0x150] sm:$0xff] %vm354, %v342
      %398 = vst.msk [vmem:[%s159 + $0x158] sm:$0xff] %vm354, %v343
      %399 = vst.msk [vmem:[%s159 + $0x160] sm:$0xff] %vm354, %v344
      %400 = vst.msk [vmem:[%s159 + $0x168] sm:$0xff] %vm354, %v345
      %401 = vst.msk [vmem:[%s159 + $0x170] sm:$0xff] %vm354, %v344
      %402 = vst.msk [vmem:[%s159 + $0x178] sm:$0xff] %vm354, %v345
      %403 = vst.msk [vmem:[%s159 + $0x180] sm:$0xff] %vm354, %v346
      %404 = vst.msk [vmem:[%s159 + $0x188] sm:$0xff] %vm354, %v347
      %405 = vst.msk [vmem:[%s159 + $0x190] sm:$0xff] %vm354, %v346
      %406 = vst.msk [vmem:[%s159 + $0x198] sm:$0xff] %vm354, %v347
      %407 = vst.msk [vmem:[%s159 + $0x1a0] sm:$0xff] %vm354, %v348
      %408 = vst.msk [vmem:[%s159 + $0x1a8] sm:$0xff] %vm354, %v349
      %409 = vst.msk [vmem:[%s159 + $0x1b0] sm:$0xff] %vm354, %v348
      %410 = vst.msk [vmem:[%s159 + $0x1b8] sm:$0xff] %vm354, %v349
      %411 = vst.msk [vmem:[%s159 + $0x1c0] sm:$0xff] %vm354, %v350
      %412 = vst.msk [vmem:[%s159 + $0x1c8] sm:$0xff] %vm354, %v351
      %413 = vst.msk [vmem:[%s159 + $0x1d0] sm:$0xff] %vm354, %v350
      %414 = vst.msk [vmem:[%s159 + $0x1d8] sm:$0xff] %vm354, %v351
      %415 = vst.msk [vmem:[%s159 + $0x1e0] sm:$0xff] %vm354, %v352
      %416 = vst.msk [vmem:[%s159 + $0x1e8] sm:$0xff] %vm354, %v353
      %417 = vst.msk [vmem:[%s159 + $0x1f0] sm:$0xff] %vm354, %v352
      %418 = vst.msk [vmem:[%s159 + $0x1f8] sm:$0xff] %vm354, %v353
      %s419 = smul.u32 16, %s17
      %p420 = scmp.lt.s32.totalorder %s16, 1
      %s421 = scalar_select %p420, %s16, 1
      %p422 = scmp.lt.s32.totalorder %s419, 15
      %s423 = scalar_select %p422, %s419, 15
      %s424 = smul.addr %s423, 4
      %s425 = smul.addr %s421, 64
      %s426 = sadd.s32 %s424, %s425
      %s427 = smul.addr %s426, 8
      %s428 = scalar_lea.vmem %s1, %s427
      // Predicated region
      $region25: #{tpu_custom_call.1} parent=23 // pred_check
        %p429 = pneg %p72
      $region26: #{tpu_custom_call.1} parent=23 // pred_check_branch
        %431 = sbr.rel (%p429) target = $region28
      $region27: #{tpu_custom_call.1} parent=23 // pred_region
        %s432 = smul.u32 16, %s17
      $region28: #{tpu_custom_call.1} parent=23 // pred_fallthru
        _
    $region24: #{tpu_custom_call.1} parent=5 // pred_fallthru
      _
    %p433 = scmp.le.s32.totalorder 2, %s7
    // Predicated region
    $region29: #{tpu_custom_call.1} parent=5 // pred_check
      %p434 = pneg %p433
    $region30: #{tpu_custom_call.1} parent=5 // pred_check_branch
      %436 = sbr.rel (%p434) target = $region32
    $region31: #{tpu_custom_call.1} parent=5 // pred_region
      %s437 = ssub.s32 %s7, 2
      // Predicated region
      $region33: #{tpu_custom_call.1} parent=31 // pred_check
        %p438 = pneg %p78
      $region34: #{tpu_custom_call.1} parent=31 // pred_check_branch
        %440 = sbr.rel (%p438) target = $region36
      $region35: #{tpu_custom_call.1} parent=31 // pred_region
        %s441 = smul.u32 16, %s19
        %p442 = scmp.lt.s32.totalorder %s18, 1
        %s443 = scalar_select %p442, %s18, 1
        %p444 = scmp.lt.s32.totalorder %s441, 15
        %s445 = scalar_select %p444, %s441, 15
        %s446 = smul.addr %s445, 4
        %s447 = smul.addr %s443, 64
        %s448 = sadd.s32 %s446, %s447
        %s449 = smul.addr %s448, 8
        %s450 = scalar_lea.vmem %s1, %s449
      $region36: #{tpu_custom_call.1} parent=31 // pred_fallthru
        _
    $region32: #{tpu_custom_call.1} parent=5 // pred_fallthru
      _
  $region6: #{tpu_custom_call.1} parent=0 // loop_footer
    %s11 = sadd.s32 1, %s7
  $region7: #{tpu_custom_call.1} parent=0 // loop_footer_branch
    %6 = sbr.rel target = $region3
  $region8: #{tpu_custom_call.1} parent=0 // loop_exit
    _

</llo_original>
